<compile_context>
chip_gen: v7x
topology: tpu7x:2x2x1
jax: 0.10.0
libtpu: 0.0.40
codegen_flags: <defaults>
</compile_context>

<pallas_src>
import jax
import jax.numpy as jnp
from jax import lax
from jax.experimental import pallas as pl
from jax.experimental.pallas import tpu as pltpu


def _round_up(x, m):
    return (x + m - 1) // m * m


# ---------------- kernel bodies ----------------
def _make_kernel(use_norm, inv_e, eps):
    if use_norm:
        def kernel(p_ref, w_ref, b_ref, g_ref, bt_ref, o_ref):
            # patches @ W + bias   (one lane-dense GEMM on the MXU)
            y = jnp.dot(p_ref[...], w_ref[...],
                        preferred_element_type=jnp.float32) + b_ref[...]
            # fused LayerNorm over the (zero-padded) embed dim.
            # Padded columns are exactly zero, so sums over E_pad == sums over E.
            mean = jnp.sum(y, axis=-1, keepdims=True) * inv_e
            var = jnp.maximum(
                jnp.sum(y * y, axis=-1, keepdims=True) * inv_e - mean * mean, 0.0)
            o_ref[...] = ((y - mean) * lax.rsqrt(var + eps) * g_ref[...]
                          + bt_ref[...]).astype(o_ref.dtype)
        return kernel

    def kernel(p_ref, w_ref, b_ref, o_ref):          # norm = Identity (default)
        y = jnp.dot(p_ref[...], w_ref[...],
                    preferred_element_type=jnp.float32) + b_ref[...]
        o_ref[...] = y.astype(o_ref.dtype)
    return kernel


# ---------------- wrapper ----------------
def patch_embed_forward(x, conv_w, conv_b, gamma=None, beta=None,
                        *, patch_size, eps=1e-5):
    """x: (B, C, H, W).  conv_w: (E, C, p, p), conv_b: (E,).
    gamma/beta: optional (E,) LayerNorm affine params (None => Identity norm).
    Returns (B, num_patches, E) float32."""
    B, C, H, W = x.shape
    p = patch_size
    assert H % p == 0 and W % p == 0, "image size must be divisible by patch size"
    Hp, Wp = H // p, W // p
    E = conv_w.shape[0]
    K = C * p * p
    N = B * Hp * Wp
    use_norm = gamma is not None

    # im2col (wrapper-side layout plumbing): (B,C,H,W) -> (N, K),
    # K ordered as (c, ph, pw) to match Conv2d weight.reshape(E, C*p*p).
    patches = (x.reshape(B, C, Hp, p, Wp, p)
                 .transpose(0, 2, 4, 1, 3, 5)
                 .reshape(N, K)).astype(jnp.float32)
    w_mat = conv_w.reshape(E, K).T.astype(jnp.float32)            # (K, E)

    # lane-pad embed dim to a multiple of 128; tile/pad rows to a multiple of 8.
    E_pad = _round_up(E, 128)
    TM = min(_round_up(N, 8), 256)
    N_pad = _round_up(N, TM)

    patches = jnp.pad(patches, ((0, N_pad - N), (0, 0)))
    w_mat = jnp.pad(w_mat, ((0, 0), (0, E_pad - E)))
    b_row = jnp.pad(conv_b.astype(jnp.float32).reshape(1, E),
                    ((0, 0), (0, E_pad - E)))

    params = [w_mat, b_row]
    if use_norm:
        params.append(jnp.pad(gamma.astype(jnp.float32).reshape(1, E),
                              ((0, 0), (0, E_pad - E))))
        params.append(jnp.pad(beta.astype(jnp.float32).reshape(1, E),
                              ((0, 0), (0, E_pad - E))))

    kernel = _make_kernel(use_norm, 1.0 / E, eps)

    in_specs = ([pl.BlockSpec((TM, K), lambda i: (i, 0)),          # row tile
                 pl.BlockSpec((K, E_pad), lambda i: (0, 0))]       # fused weight
                + [pl.BlockSpec((1, E_pad), lambda i: (0, 0))]     # bias/gamma/beta
                * (len(params) - 1))
    out_specs = pl.BlockSpec((TM, E_pad), lambda i: (i, 0))

    out = pl.pallas_call(
        kernel,
        out_shape=jax.ShapeDtypeStruct((N_pad, E_pad), jnp.float32),
        grid_spec=pltpu.PrefetchScalarGridSpec(
            num_scalar_prefetch=0,
            grid=(N_pad // TM,),
            in_specs=in_specs,
            out_specs=out_specs),
        compiler_params=pltpu.CompilerParams(
            dimension_semantics=("parallel",)),
    )(patches, *params)

    return out[:N, :E].reshape(B, Hp * Wp, E)


# ---------------- pure-JAX reference (independent: real conv) ----------------
def patch_embed_ref(x, conv_w, conv_b, gamma=None, beta=None,
                    *, patch_size, eps=1e-5):
    p = patch_size
    y = lax.conv_general_dilated(
        x.astype(jnp.float32), conv_w.astype(jnp.float32),
        window_strides=(p, p), padding="VALID",
        dimension_numbers=("NCHW", "OIHW", "NCHW"),
        precision=lax.Precision.HIGHEST)
    y = y + conv_b.astype(jnp.float32)[None, :, None, None]
    B, E, Hp, Wp = y.shape
    y = y.reshape(B, E, Hp * Wp).transpose(0, 2, 1)               # (B, L, E)
    if gamma is not None:
        mean = y.mean(-1, keepdims=True)
        var = ((y - mean) ** 2).mean(-1, keepdims=True)
        y = (y - mean) / jnp.sqrt(var + eps) * gamma + beta
    return y


# ---------------- main ----------------
if __name__ == "__main__":
    BATCH, CIN, IMG, PATCH, EMBED = 2, 3, 16, 4, 32

    key = jax.random.PRNGKey(0)
    kx, kw, kb, kg, kbt = jax.random.split(key, 5)
    x = jax.random.normal(kx, (BATCH, CIN, IMG, IMG), jnp.float32)
    conv_w = 0.10 * jax.random.normal(kw, (EMBED, CIN, PATCH, PATCH), jnp.float32)
    conv_b = 0.05 * jax.random.normal(kb, (EMBED,), jnp.float32)
    gamma = 1.0 + 0.10 * jax.random.normal(kg, (EMBED,), jnp.float32)
    beta = 0.05 * jax.random.normal(kbt, (EMBED,), jnp.float32)

    # norm_layer=None (Identity) path — PatchEmbed's default forward
    out_id = patch_embed_forward(x, conv_w, conv_b, patch_size=PATCH)
    # norm_layer=LayerNorm path — how the hierarchical model builds it (patch_norm)
    out_ln = patch_embed_forward(x, conv_w, conv_b, gamma, beta, patch_size=PATCH)
    jax.block_until_ready((out_id, out_ln))

    ref_id = patch_embed_ref(x, conv_w, conv_b, patch_size=PATCH)
    ref_ln = patch_embed_ref(x, conv_w, conv_b, gamma, beta, patch_size=PATCH)

    for got, want in ((out_id, ref_id), (out_ln, ref_ln)):
        assert got.shape == (BATCH, (IMG // PATCH) ** 2, EMBED)
        err = float(jnp.max(jnp.abs(got - want)))
        assert err < 1e-3, f"kernel/reference mismatch: max abs err = {err}"

    print("KERNEL_OK")
</pallas_src>

<mosaic_0001>
module attributes {stable_mosaic.version = 11 : i64} {
  func.func @kernel(%arg0: i32, %arg1: memref<32x48xf32, #tpu.memory_space<vmem>>, %arg2: memref<48x128xf32, #tpu.memory_space<vmem>>, %arg3: memref<1x128xf32, #tpu.memory_space<vmem>>, %arg4: memref<32x128xf32, #tpu.memory_space<vmem>>) attributes {dimension_semantics = [#tpu.dimension_semantics<parallel>], iteration_bounds = array<i64: 1>, scalar_prefetch = 0 : i64, scratch_operands = 0 : i64, tpu.core_type = #tpu.core_type<tc>, window_params = [{transform_indices = @transform_0, window_bounds = array<i64: 32, 48>}, {pipeline_mode = #tpu.pipeline_mode<synchronous>, transform_indices = @transform_1, window_bounds = array<i64: 48, 128>}, {pipeline_mode = #tpu.pipeline_mode<synchronous>, transform_indices = @transform_2, window_bounds = array<i64: 1, 128>}, {transform_indices = @transform_3, window_bounds = array<i64: 32, 128>}]} {
    %c0 = arith.constant 0 : index
    %c0_0 = arith.constant 0 : index
    %0 = vector.load %arg1[%c0, %c0_0] : memref<32x48xf32, #tpu.memory_space<vmem>>, vector<32x48xf32>
    %c0_1 = arith.constant 0 : index
    %c0_2 = arith.constant 0 : index
    %1 = vector.load %arg2[%c0_1, %c0_2] : memref<48x128xf32, #tpu.memory_space<vmem>>, vector<48x128xf32>
    %cst = arith.constant dense<0.000000e+00> : vector<32x128xf32>
    %2 = tpu.matmul %0, %1, %cst {dimension_numbers = #tpu.dot_dimension_numbers<[1], [0], [0], [1], [0, 0, 1, 1], [], []>} : vector<32x48xf32>, vector<48x128xf32>, vector<32x128xf32> -> vector<32x128xf32>
    %c0_3 = arith.constant 0 : index
    %c0_4 = arith.constant 0 : index
    %3 = vector.load %arg3[%c0_3, %c0_4] : memref<1x128xf32, #tpu.memory_space<vmem>>, vector<1x128xf32>
    %4 = vector.broadcast %3 : vector<1x128xf32> to vector<32x128xf32>
    %5 = arith.addf %2, %4 : vector<32x128xf32>
    %c0_5 = arith.constant 0 : index
    %c0_6 = arith.constant 0 : index
    %6 = vector.load %arg4[%c0_5, %c0_6] : memref<32x128xf32, #tpu.memory_space<vmem>>, vector<32x128xf32>
    tpu.vector_store %arg4[%c0_5, %c0_6], %5 {strides = array<i32>} : memref<32x128xf32, #tpu.memory_space<vmem>>, vector<32x128xf32>,
    return
  }
  func.func @transform_0(%arg0: i32) -> (i32, i32) {
    %c0_i32 = arith.constant 0 : i32
    %c0_i32_0 = arith.constant 0 : i32
    return %arg0, %c0_i32 : i32, i32
  }
  func.func @transform_1(%arg0: i32) -> (i32, i32) {
    %c0_i32 = arith.constant 0 : i32
    %c0_i32_0 = arith.constant 0 : i32
    %c0_i32_1 = arith.constant 0 : i32
    return %c0_i32, %c0_i32_0 : i32, i32
  }
  func.func @transform_2(%arg0: i32) -> (i32, i32) {
    %c0_i32 = arith.constant 0 : i32
    %c0_i32_0 = arith.constant 0 : i32
    %c0_i32_1 = arith.constant 0 : i32
    return %c0_i32, %c0_i32_0 : i32, i32
  }
  func.func @transform_3(%arg0: i32) -> (i32, i32) {
    %c0_i32 = arith.constant 0 : i32
    %c0_i32_0 = arith.constant 0 : i32
    return %arg0, %c0_i32 : i32, i32
  }
}

</mosaic_0001>

<llo_original>
// kernel: tpu_custom_call.1
$region0: #{tpu_custom_call.1}
  #allocation0 [shape = 'u32[]', space=smem, size = 0x4, offset = 0x4, fixed_abs, tag = 'smem constant byte address 0x4 - core index']
  #allocation1 [shape = 'u32[144,128]{1,0:T(1,128)}', space=vmem, size = 0x12000, scoped, tag = 'internal scratch']
  %s0 = inlined_call_operand.hbm [shape: f32[32,48], index: 0, kind: input, shape index: {}]
  %s1 = inlined_call_operand.hbm [shape: f32[48,128], index: 1, kind: input, shape index: {}]
  %s2 = inlined_call_operand.vmem [shape: f32[1,128], index: 2, kind: input, shape index: {}]
  %s3 = inlined_call_operand.hbm [shape: f32[32,128], index: 3, kind: output, shape index: {}]
  %s4 = sld [smem:[#allocation0]]
  $region30: #{tpu_custom_call.1} parent=0
    _
  %s6 = ssub.s32 1, %s4
  %s7 = scalar_select 0, %s6, %s4
  $region1: #{tpu_custom_call.1} parent=0
    #allocation2 [shape = 'u8[16384]{0}', space=vmem, size = 0x4000, scoped, tag = 'input window, operand 0, single buffered']
    #allocation3 [shape = 's32[1]{0}', space=sflag, size = 0x4, scoped, tag = 'scoped memory for tpu_custom_call.1']
    #allocation4 [shape = 's32[1]{0}', space=sflag, size = 0x4, scoped, tag = 'scoped memory for tpu_custom_call.1']
    #allocation5 [shape = 'u8[24576]{0}', space=vmem, size = 0x6000, scoped, tag = 'input window, operand 1, single buffered']
    #allocation6 [shape = 's32[1]{0}', space=sflag, size = 0x4, scoped, tag = 'scoped memory for tpu_custom_call.1']
    #allocation7 [shape = 'u8[16384]{0}', space=vmem, size = 0x4000, scoped, tag = 'output window, operand 0, single buffered']
    %8 = vsyncpa [#allocation3], 0
    %9 = vsyncpa [#allocation6], 0
    %10 = vsyncpa [#allocation4], 0
    // Predicated region
    $region2: #{tpu_custom_call.1} parent=1 // pred_check
      _
    $region3: #{tpu_custom_call.1} parent=1 // pred_check_branch
      %12 = sbr.rel (0) target = $region5
    $region4: #{tpu_custom_call.1} parent=1 // pred_region
      %s14 = ssub.s32 512, 512
      %15 = vsyncadd [#allocation3], %s14
      %s16 = sshll.u32 [#allocation2], 4
      %s17 = int_to_ptr.vmem [resolvable:$true] %s16
      %22 = dma.hbm_to_vmem [thread:$0]  %s0, 512, %s17, [#allocation3], 128, 128, 8
    $region5: #{tpu_custom_call.1} parent=1 // pred_fallthru
      _
    // Predicated region
    $region6: #{tpu_custom_call.1} parent=1 // pred_check
      _
    $region7: #{tpu_custom_call.1} parent=1 // pred_check_branch
      %24 = sbr.rel (0) target = $region9
    $region8: #{tpu_custom_call.1} parent=1 // pred_region
      %s26 = ssub.s32 768, 768
      %27 = vsyncadd [#allocation6], %s26
      %s28 = sshll.u32 [#allocation5], 4
      %s29 = int_to_ptr.vmem [resolvable:$true] %s28
      %34 = dma.hbm_to_vmem [thread:$0]  %s1, 768, %s29, [#allocation6], 128, 128, 8
    $region9: #{tpu_custom_call.1} parent=1 // pred_fallthru
      _
    // Predicated region
    $region10: #{tpu_custom_call.1} parent=1 // pred_check
      _
    $region11: #{tpu_custom_call.1} parent=1 // pred_check_branch
      %36 = sbr.rel (0) target = $region13
    $region12: #{tpu_custom_call.1} parent=1 // pred_region
      _
    $region13: #{tpu_custom_call.1} parent=1 // pred_fallthru
      _
    // Predicated region
    $region14: #{tpu_custom_call.1} parent=1 // pred_check
      _
    $region15: #{tpu_custom_call.1} parent=1 // pred_check_branch
      %38 = sbr.rel (0) target = $region17
    $region16: #{tpu_custom_call.1} parent=1 // pred_region
      %39 = dma.done [#allocation3], 512
    $region17: #{tpu_custom_call.1} parent=1 // pred_fallthru
      _
    // Predicated region
    $region18: #{tpu_custom_call.1} parent=1 // pred_check
      _
    $region19: #{tpu_custom_call.1} parent=1 // pred_check_branch
      %41 = sbr.rel (0) target = $region21
    $region20: #{tpu_custom_call.1} parent=1 // pred_region
      %42 = dma.done [#allocation6], 768
    $region21: #{tpu_custom_call.1} parent=1 // pred_fallthru
      _
    %v43 = vld [vmem:[#allocation2] sm:$0xff]
    %v44 = vld [vmem:[#allocation2 + $0x8] sm:$0xff]
    %v45 = vld [vmem:[#allocation2 + $0x10] sm:$0xff]
    %v46 = vld [vmem:[#allocation2 + $0x18] sm:$0xff]
    %v47 = vld [vmem:[#allocation5] sm:$0xff]
    %v48 = vld [vmem:[#allocation5 + $0x8] sm:$0xff]
    %v49 = vld [vmem:[#allocation5 + $0x10] sm:$0xff]
    %v50 = vld [vmem:[#allocation5 + $0x18] sm:$0xff]
    %v51 = vld [vmem:[#allocation5 + $0x20] sm:$0xff]
    %v52 = vld [vmem:[#allocation5 + $0x28] sm:$0xff]
    %v53 = vld [vmem:[%s2] sm:$0x1]
    %v55 = vlaneseq
    %v56 = vshrl.u32 %v55, 7
    %v57 = vsub.s32 0, %v56
    %v58 = vrot.slane %v53, %v57
    %vm60 = vcmask 392192
    %v62 = vsel %vm60, %v43, 0
    %v65 = vsel %vm60, %v44, 0
    %v68 = vsel %vm60, %v45, 0
    %v71 = vsel %vm60, %v46, 0
    %73 = vmatprep.subr.mxu0 0.0
    %74 = vmatpush1.msra.mxu0 %v47
    %75 = vmatprep.subr.mxu0 0.0
    %76 = vmatpush1.msra.mxu0 %v48
    %77 = vmatprep.subr.mxu0 0.0
    %78 = vmatpush1.msra.mxu0 %v49
    %79 = vmatprep.subr.mxu0 0.0
    %80 = vmatpush1.msra.mxu0 %v50
    %81 = vmatprep.subr.mxu0 0.0
    %82 = vmatpush1.msra.mxu0 %v51
    %83 = vmatprep.subr.mxu0 0.0
    %84 = vmatpush1.msra.mxu0 %v52
    %85 = vmatprep.subr.mxu0 0.0
    %86 = vmatpush1.msra.mxu0 0.0
    %87 = vmatprep.subr.mxu0 0.0
    %88 = vmatpush1.msra.mxu0 0.0
    %89 = vmatprep.subr.mxu0 0.0
    %90 = vmatpush1.msra.mxu0 0.0
    %91 = vmatprep.subr.mxu0 0.0
    %92 = vmatpush1.msra.mxu0 0.0
    %93 = vmatprep.subr.mxu0 0.0
    %94 = vmatpush1.msra.mxu0 0.0
    %95 = vmatprep.subr.mxu0 0.0
    %96 = vmatpush1.msra.mxu0 0.0
    %97 = vmatprep.subr.mxu0 0.0
    %98 = vmatpush1.msra.mxu0 0.0
    %99 = vmatprep.subr.mxu0 0.0
    %100 = vmatpush1.msra.mxu0 0.0
    %101 = vmatprep.subr.mxu0 0.0
    %102 = vmatpush1.msra.mxu0 0.0
    %103 = vmatprep.subr.mxu0 0.0
    %104 = vmatpush1.msra.mxu0 0.0
    %105 = vmatprep.subr.mxu0 0.0
    %106 = vmatpush1.msra.mxu0 0.0
    %107 = vmatprep.subr.mxu0 0.0
    %108 = vmatpush1.msra.mxu0 0.0
    %109 = vmatprep.subr.mxu0 0.0
    %110 = vmatpush1.msra.mxu0 0.0
    %111 = vmatprep.subr.mxu0 0.0
    %112 = vmatpush1.msra.mxu0 0.0
    %113 = vmatprep.subr.mxu0 0.0
    %114 = vmatpush1.msra.mxu0 0.0
    %115 = vmatprep.subr.mxu0 0.0
    %116 = vmatpush1.msra.mxu0 0.0
    %117 = vmatprep.subr.mxu0 0.0
    %118 = vmatpush1.msra.mxu0 0.0
    %119 = vmatprep.subr.mxu0 0.0
    %120 = vmatpush1.msra.mxu0 0.0
    %121 = vmatprep.subr.mxu0 0.0
    %122 = vmatpush1.msra.mxu0 0.0
    %123 = vmatprep.subr.mxu0 0.0
    %124 = vmatpush1.msra.mxu0 0.0
    %125 = vmatprep.subr.mxu0 0.0
    %126 = vmatpush1.msra.mxu0 0.0
    %127 = vmatprep.subr.mxu0 0.0
    %128 = vmatpush1.msra.mxu0 0.0
    %129 = vmatprep.subr.mxu0 0.0
    %130 = vmatpush1.msra.mxu0 0.0
    %131 = vmatprep.subr.mxu0 0.0
    %132 = vmatpush1.msra.mxu0 0.0
    %133 = vmatprep.subr.mxu0 0.0
    %134 = vmatpush1.msra.mxu0 0.0
    %135 = vmatprep.subr.mxu0 0.0
    %136 = vmatpush1.msra.mxu0 0.0
    %137 = vmatprep.mubr.f32.mxu0 0.0
    %138 = vmatmul.mubr.f32.gmra.mrb[0].mxu0 %v62
    %v139 = vpop.f32.mrb[0].mxu0
    %v140 = vadd.f32 %v58, %v139
    %v141 = vpop.f32.mrb[0].mxu0
    %142 = vmatprep.mubr.f32.mxu0 0.0
    %143 = vmatmul.mubr.f32.gmra.mrb[0].mxu0 %v65
    %v144 = vpop.f32.mrb[0].mxu0
    %v145 = vadd.f32 %v58, %v144
    %v146 = vpop.f32.mrb[0].mxu0
    %147 = vmatprep.mubr.f32.mxu0 0.0
    %148 = vmatmul.mubr.f32.gmra.mrb[0].mxu0 %v68
    %v149 = vpop.f32.mrb[0].mxu0
    %v150 = vadd.f32 %v58, %v149
    %v151 = vpop.f32.mrb[0].mxu0
    %152 = vmatprep.mubr.f32.mxu0 0.0
    %153 = vmatmul.mubr.f32.gmra.mrb[0].mxu0 %v71
    %v154 = vpop.f32.mrb[0].mxu0
    %v155 = vadd.f32 %v58, %v154
    %v156 = vpop.f32.mrb[0].mxu0
    %157 = vdwg.mxu0
    %158 = vst [vmem:[#allocation7] sm:$0xff] %v140
    %159 = vst [vmem:[#allocation7 + $0x8] sm:$0xff] %v145
    %160 = vst [vmem:[#allocation7 + $0x10] sm:$0xff] %v150
    %161 = vst [vmem:[#allocation7 + $0x18] sm:$0xff] %v155
    // Predicated region
    $region22: #{tpu_custom_call.1} parent=1 // pred_check
      _
    $region23: #{tpu_custom_call.1} parent=1 // pred_check_branch
      %163 = sbr.rel (0) target = $region25
    $region24: #{tpu_custom_call.1} parent=1 // pred_region
      %s165 = ssub.s32 512, 512
      %166 = vsyncadd [#allocation4], %s165
      %s167 = sshll.u32 [#allocation7], 4
      %s168 = int_to_ptr.vmem [resolvable:$true] %s167
      %173 = dma.vmem_to_hbm [thread:$0]  %s168, 512, %s3, [#allocation4], 128, 128, 8
    $region25: #{tpu_custom_call.1} parent=1 // pred_fallthru
      _
    // Predicated region
    $region26: #{tpu_custom_call.1} parent=1 // pred_check
      _
    $region27: #{tpu_custom_call.1} parent=1 // pred_check_branch
      %175 = sbr.rel (0) target = $region29
    $region28: #{tpu_custom_call.1} parent=1 // pred_region
      %176 = dma.done [#allocation4], 512
    $region29: #{tpu_custom_call.1} parent=1 // pred_fallthru
      _
    %177 = vsyncpa [#allocation3], 1
    %178 = vsyncpa [#allocation6], 1
    %179 = vsyncpa [#allocation4], 1

</llo_original>
